<compile_context>
chip_gen: v7x
topology: tpu7x:2x2x1
jax: 0.10.0
libtpu: 0.0.40
codegen_flags: <defaults>
</compile_context>

<pallas_src>
import functools

import jax
import jax.numpy as jnp
from jax.experimental import pallas as pl
from jax.experimental.pallas import tpu as pltpu

_SUBLANE = 8
_LANE = 128


def _round_up(x, m):
    return (x + m - 1) // m * m


def _node_tiling(n):
    """Pick destination-node tile TM and padded node count N_p (TM divides N_p)."""
    if n > 256:
        tm = 256                       # 256-multiple tiles feed the 256-wide MXU (v6e/v7x)
        return _round_up(n, tm), tm
    n_p = _round_up(n, _SUBLANE)
    return n_p, n_p


# ------------------- kernel 1: per-relation feature transform -------------------
def _feat_xform_kernel(x_ref, w_ref, z_ref):
    # Z[r, n_tile] = X[n_tile] @ W[r]   (bf16 inputs, f32 MXU accumulation)
    z_ref[0] = jnp.dot(
        x_ref[...], w_ref[0], preferred_element_type=jnp.float32
    ).astype(z_ref.dtype)


def feat_xform(x_bf16, w_bf16, *, tn):
    """x_bf16: (N_p, Fin_p) bf16; w_bf16: (R, Fin_p, Fout_p) bf16 -> Z (R, N_p, Fout_p) bf16."""
    R, Fin, Fout = w_bf16.shape
    N = x_bf16.shape[0]
    flops = 2 * R * N * Fin * Fout
    bytes_accessed = 2 * (N * Fin + R * Fin * Fout + R * N * Fout)
    return pl.pallas_call(
        _feat_xform_kernel,
        out_shape=jax.ShapeDtypeStruct((R, N, Fout), jnp.bfloat16),
        grid_spec=pltpu.PrefetchScalarGridSpec(
            num_scalar_prefetch=0,
            grid=(R, N // tn),
            in_specs=[
                pl.BlockSpec((tn, Fin), lambda r, n: (n, 0)),          # X tile
                pl.BlockSpec((1, Fin, Fout), lambda r, n: (r, 0, 0)),  # W_r (reused over n)
            ],
            out_specs=pl.BlockSpec((1, tn, Fout), lambda r, n: (r, n, 0)),
        ),
        compiler_params=pltpu.CompilerParams(
            dimension_semantics=("parallel", "parallel")),
        cost_estimate=pl.CostEstimate(
            flops=int(flops), transcendentals=0, bytes_accessed=int(bytes_accessed)),
    )(x_bf16, w_bf16)


# ------------------- kernel 2: dst-tiled relational aggregation -----------------
def _aggregate_kernel(a_ref, z_ref, b_ref, out_ref, *, apply_relu):
    """out[i_tile] = sum_r A_hat[r, i_tile, :] @ Z[r]  (+ bias, relu at last r)."""
    r = pl.program_id(1)

    @pl.when(r == 0)
    def _():
        out_ref[...] = jnp.zeros_like(out_ref)

    # bf16 x bf16 -> f32 accumulate directly into the resident output block.
    out_ref[...] += jnp.dot(a_ref[0], z_ref[0], preferred_element_type=jnp.float32)

    @pl.when(r == pl.num_programs(1) - 1)
    def _():
        h = out_ref[...] + b_ref[...]
        if apply_relu:
            h = jnp.maximum(h, 0.0)
        out_ref[...] = h


def aggregate(adj_hat_bf16, z_bf16, bias_f32, *, tm, apply_relu):
    """adj_hat_bf16: (R, N_p, N_p) pre-normalized bf16; z_bf16: (R, N_p, Fout_p) bf16;
    bias_f32: (1, Fout_p) f32 -> (N_p, Fout_p) f32."""
    R, N, _ = adj_hat_bf16.shape
    Fout = z_bf16.shape[2]
    flops = 2 * R * N * N * Fout
    bytes_accessed = 2 * R * N * N + 2 * R * N * Fout + 4 * N * Fout + 4 * Fout
    kernel = functools.partial(_aggregate_kernel, apply_relu=apply_relu)
    return pl.pallas_call(
        kernel,
        out_shape=jax.ShapeDtypeStruct((N, Fout), jnp.float32),
        grid_spec=pltpu.PrefetchScalarGridSpec(
            num_scalar_prefetch=0,
            grid=(N // tm, R),                                    # dst tiles outer, relations inner
            in_specs=[
                pl.BlockSpec((1, tm, N), lambda i, r: (r, i, 0)),       # A_hat_r dst-tile (src whole)
                pl.BlockSpec((1, N, Fout), lambda i, r: (r, 0, 0)),     # Z_r
                pl.BlockSpec((1, Fout), lambda i, r: (0, 0)),           # bias (resident)
            ],
            out_specs=pl.BlockSpec((tm, Fout), lambda i, r: (i, 0)),    # resident across r
        ),
        compiler_params=pltpu.CompilerParams(
            dimension_semantics=("parallel", "arbitrary")),
        cost_estimate=pl.CostEstimate(
            flops=int(flops), transcendentals=0, bytes_accessed=int(bytes_accessed)),
    )(adj_hat_bf16, z_bf16, bias_f32)


# --------------------------------- layer / model --------------------------------
def rgcn_layer(adj_hat_bf16, h_bf16, w, b, *, tm, apply_relu):
    """One RelGraphConvLayer on padded inputs. Returns (N_p, Fout_p) f32."""
    R, Fin, Fout = w.shape
    Fin_p = _round_up(Fin, _LANE)
    Fout_p = _round_up(Fout, _LANE)
    w_p = jnp.pad(w, ((0, 0), (0, Fin_p - Fin), (0, Fout_p - Fout))).astype(jnp.bfloat16)
    b_p = jnp.pad(b, (0, Fout_p - Fout)).reshape(1, Fout_p).astype(jnp.float32)
    z = feat_xform(h_bf16, w_p, tn=tm)                       # (R, N_p, Fout_p) bf16
    return aggregate(adj_hat_bf16, z, b_p, tm=tm, apply_relu=apply_relu)


def rgcn_forward(adj, x, params):
    """Full RGCN forward (single node type).

    adj: (R, N, N) dense relation adjacencies (A[r, dst, src]).
    x:   (N, in_dim) raw node features (degree feature concatenated here,
         mirroring `th.cat([feat, degree.unsqueeze(1)], dim=1)`).
    params: list of (weight (R, Fin, Fout), bias (Fout,)) per layer.
    """
    R, N, _ = adj.shape
    # graph.ndata['degree'] -> total in-degree over all relations (exact, f32).
    degree = jnp.sum(adj, axis=(0, 2))[:, None]
    h = jnp.concatenate([x, degree], axis=1)                 # (N, in_dim + 1)

    # Pre-normalize adjacency ONCE in f32 (GraphConv norm='right'), then cast bf16.
    deg_r = jnp.sum(adj, axis=-1, keepdims=True)             # (R, N, 1)
    adj_hat = adj / jnp.maximum(deg_r, 1.0)

    # Pad node dim to a tile-friendly count; padded rows/cols are zero (inert).
    N_p, tm = _node_tiling(N)
    adj_hat_bf16 = jnp.pad(
        adj_hat, ((0, 0), (0, N_p - N), (0, N_p - N))).astype(jnp.bfloat16)

    Fin0 = h.shape[1]
    Fin0_p = _round_up(Fin0, _LANE)
    h_bf16 = jnp.pad(h, ((0, N_p - N), (0, Fin0_p - Fin0))).astype(jnp.bfloat16)

    n_layers = len(params)
    out_dim = params[-1][0].shape[2]
    h_f32 = None
    for i, (w, b) in enumerate(params):
        h_f32 = rgcn_layer(adj_hat_bf16, h_bf16, w, b, tm=tm,
                           apply_relu=(i < n_layers - 1))
        if i < n_layers - 1:
            h_bf16 = h_f32.astype(jnp.bfloat16)              # next layer's matmul input
    return h_f32[:N, :out_dim]


# ----------------------------- reference (pure JAX, f32) ------------------------
def rgcn_reference(adj, x, params):
    degree = jnp.sum(adj, axis=(0, 2))[:, None]
    h = jnp.concatenate([x, degree], axis=1)
    n_layers = len(params)
    for i, (w, b) in enumerate(params):
        acc = jnp.zeros((h.shape[0], w.shape[2]), jnp.float32)
        for r in range(adj.shape[0]):
            deg = jnp.sum(adj[r], axis=-1, keepdims=True)
            norm = 1.0 / jnp.maximum(deg, 1.0)
            acc = acc + norm * (adj[r] @ (h @ w[r]))
        h = acc + b[None, :]
        if i < n_layers - 1:
            h = jnp.maximum(h, 0.0)
    return h


def xavier_uniform(key, shape, gain):
    # PyTorch xavier_uniform_ on (R, fan_in, fan_out): uses the last two dims.
    fan_in, fan_out = shape[-2], shape[-1]
    bound = gain * jnp.sqrt(6.0 / (fan_in + fan_out))
    return jax.random.uniform(key, shape, jnp.float32, -bound, bound)


if __name__ == "__main__":
    # Small deterministic setup.
    N = 16          # nodes
    R = 3           # relations (etypes), num_bases = R -> no weight basis
    in_dim = 8      # raw input features (model uses in_dim + 1 after degree concat)
    hidden = 16
    out_dim = 8
    num_hidden_layers = 1

    key = jax.random.PRNGKey(0)
    n_layer_params = num_hidden_layers + 2
    k_adj, k_x, *k_w = jax.random.split(key, 2 + n_layer_params)

    # Dense relation adjacencies (A[r, dst, src]) and node features.
    adj = (jax.random.uniform(k_adj, (R, N, N)) < 0.3).astype(jnp.float32)
    x = jax.random.normal(k_x, (N, in_dim), jnp.float32)

    gain = jnp.sqrt(2.0)  # nn.init.calculate_gain('relu')
    dims = [in_dim + 1] + [hidden] * (num_hidden_layers + 1) + [out_dim]
    params = []
    for i in range(len(dims) - 1):
        w = xavier_uniform(k_w[i], (R, dims[i], dims[i + 1]), gain)
        b = jnp.zeros((dims[i + 1],), jnp.float32)  # nn.init.zeros_(h_bias)
        params.append((w, b))

    rgcn_jit = jax.jit(rgcn_forward)
    out = jax.block_until_ready(rgcn_jit(adj, x, params))
    assert out.shape == (N, out_dim)

    # Correctness vs f32 reference (kernel uses bf16 matmul inputs -> small,
    # scale-relative deviation is expected and bounded well under 8%).
    ref = rgcn_reference(adj, x, params)
    rel_err = float(jnp.max(jnp.abs(out - ref)) / (jnp.max(jnp.abs(ref)) + 1e-6))
    assert rel_err < 0.08, f"mismatch vs. JAX reference (rel_err={rel_err})"

    # TODO(synk): weight-basis decomposition (num_bases < R), self_loop, dropout
    # and batchnorm paths are inactive at the module defaults and not implemented.
    print("KERNEL_OK")
</pallas_src>

<mosaic_0001>
module attributes {stable_mosaic.version = 11 : i64} {
  func.func @_feat_xform_kernel(%arg0: i32, %arg1: i32, %arg2: memref<16x128xbf16, #tpu.memory_space<vmem>>, %arg3: memref<1x128x128xbf16, #tpu.memory_space<vmem>>, %arg4: memref<1x16x128xbf16, #tpu.memory_space<vmem>>) attributes {dimension_semantics = [#tpu.dimension_semantics<parallel>, #tpu.dimension_semantics<parallel>], iteration_bounds = array<i64: 3, 1>, scalar_prefetch = 0 : i64, scratch_operands = 0 : i64, tpu.core_type = #tpu.core_type<tc>, window_params = [{transform_indices = @transform_0, window_bounds = array<i64: 16, 128>}, {transform_indices = @transform_1, window_bounds = array<i64: 1, 128, 128>}, {transform_indices = @transform_2, window_bounds = array<i64: 1, 16, 128>}]} {
    %c0 = arith.constant 0 : index
    %c0_0 = arith.constant 0 : index
    %0 = vector.load %arg2[%c0, %c0_0] : memref<16x128xbf16, #tpu.memory_space<vmem>>, vector<16x128xbf16>
    %c0_1 = arith.constant 0 : index
    %c0_2 = arith.constant 0 : index
    %c0_3 = arith.constant 0 : index
    %1 = vector.load %arg3[%c0_1, %c0_2, %c0_3] : memref<1x128x128xbf16, #tpu.memory_space<vmem>>, vector<1x128x128xbf16>
    %2 = vector.shape_cast %1 : vector<1x128x128xbf16> to vector<128x128xbf16>
    %cst = arith.constant dense<0.000000e+00> : vector<16x128xf32>
    %3 = tpu.matmul %0, %2, %cst {dimension_numbers = #tpu.dot_dimension_numbers<[1], [0], [0], [1], [0, 0, 1, 1], [], []>} : vector<16x128xbf16>, vector<128x128xbf16>, vector<16x128xf32> -> vector<16x128xf32>
    %4 = arith.truncf %3 : vector<16x128xf32> to vector<16x128xbf16>
    %c0_4 = arith.constant 0 : index
    %c0_5 = arith.constant 0 : index
    %c0_6 = arith.constant 0 : index
    %5 = vector.load %arg4[%c0_4, %c0_5, %c0_6] : memref<1x16x128xbf16, #tpu.memory_space<vmem>>, vector<1x16x128xbf16>
    %6 = vector.shape_cast %5 : vector<1x16x128xbf16> to vector<16x128xbf16>
    %7 = vector.shape_cast %4 : vector<16x128xbf16> to vector<1x16x128xbf16>
    tpu.vector_store %arg4[%c0_4, %c0_5, %c0_6], %7 {strides = array<i32>} : memref<1x16x128xbf16, #tpu.memory_space<vmem>>, vector<1x16x128xbf16>,
    return
  }
  func.func @transform_0(%arg0: i32, %arg1: i32) -> (i32, i32) {
    %c0_i32 = arith.constant 0 : i32
    %c0_i32_0 = arith.constant 0 : i32
    return %arg1, %c0_i32 : i32, i32
  }
  func.func @transform_1(%arg0: i32, %arg1: i32) -> (i32, i32, i32) {
    %c0_i32 = arith.constant 0 : i32
    %c0_i32_0 = arith.constant 0 : i32
    %c0_i32_1 = arith.constant 0 : i32
    return %arg0, %c0_i32, %c0_i32_0 : i32, i32, i32
  }
  func.func @transform_2(%arg0: i32, %arg1: i32) -> (i32, i32, i32) {
    %c0_i32 = arith.constant 0 : i32
    %c0_i32_0 = arith.constant 0 : i32
    return %arg0, %arg1, %c0_i32 : i32, i32, i32
  }
}

module attributes {stable_mosaic.version = 11 : i64} {
  func.func @_aggregate_kernel(%arg0: i32, %arg1: i32, %arg2: memref<1x16x16xbf16, #tpu.memory_space<vmem>>, %arg3: memref<1x16x128xbf16, #tpu.memory_space<vmem>>, %arg4: memref<1x128xf32, #tpu.memory_space<vmem>>, %arg5: memref<16x128xf32, #tpu.memory_space<vmem>>) attributes {dimension_semantics = [#tpu.dimension_semantics<parallel>, #tpu.dimension_semantics<arbitrary>], iteration_bounds = array<i64: 1, 3>, scalar_prefetch = 0 : i64, scratch_operands = 0 : i64, tpu.core_type = #tpu.core_type<tc>, window_params = [{transform_indices = @transform_0, window_bounds = array<i64: 1, 16, 16>}, {transform_indices = @transform_1, window_bounds = array<i64: 1, 16, 128>}, {pipeline_mode = #tpu.pipeline_mode<synchronous>, transform_indices = @transform_2, window_bounds = array<i64: 1, 128>}, {transform_indices = @transform_3, window_bounds = array<i64: 16, 128>}]} {
    %c0_i32 = arith.constant 0 : i32
    %0 = arith.cmpi eq, %arg1, %c0_i32 : i32
    %1 = arith.extui %0 : i1 to i32
    %c0_i32_0 = arith.constant 0 : i32
    %2 = arith.cmpi ne, %1, %c0_i32_0 : i32
    scf.if %2 {
      %cst_11 = arith.constant 0.000000e+00 : f32
      %14 = vector.broadcast %cst_11 : f32 to vector<16x128xf32>
      %c0_12 = arith.constant 0 : index
      %c0_13 = arith.constant 0 : index
      %15 = vector.load %arg5[%c0_12, %c0_13] : memref<16x128xf32, #tpu.memory_space<vmem>>, vector<16x128xf32>
      tpu.vector_store %arg5[%c0_12, %c0_13], %14 {strides = array<i32>} : memref<16x128xf32, #tpu.memory_space<vmem>>, vector<16x128xf32>,
    } else {
    }
    %c0 = arith.constant 0 : index
    %c0_1 = arith.constant 0 : index
    %3 = vector.load %arg5[%c0, %c0_1] : memref<16x128xf32, #tpu.memory_space<vmem>>, vector<16x128xf32>
    %c0_2 = arith.constant 0 : index
    %c0_3 = arith.constant 0 : index
    %c0_4 = arith.constant 0 : index
    %4 = vector.load %arg2[%c0_2, %c0_3, %c0_4] : memref<1x16x16xbf16, #tpu.memory_space<vmem>>, vector<1x16x16xbf16>
    %5 = vector.shape_cast %4 : vector<1x16x16xbf16> to vector<16x16xbf16>
    %c0_5 = arith.constant 0 : index
    %c0_6 = arith.constant 0 : index
    %c0_7 = arith.constant 0 : index
    %6 = vector.load %arg3[%c0_5, %c0_6, %c0_7] : memref<1x16x128xbf16, #tpu.memory_space<vmem>>, vector<1x16x128xbf16>
    %7 = vector.shape_cast %6 : vector<1x16x128xbf16> to vector<16x128xbf16>
    %cst = arith.constant dense<0.000000e+00> : vector<16x128xf32>
    %8 = tpu.matmul %5, %7, %cst {dimension_numbers = #tpu.dot_dimension_numbers<[1], [0], [0], [1], [0, 0, 1, 1], [], []>} : vector<16x16xbf16>, vector<16x128xbf16>, vector<16x128xf32> -> vector<16x128xf32>
    %9 = arith.addf %3, %8 : vector<16x128xf32>
    %c0_8 = arith.constant 0 : index
    %c0_9 = arith.constant 0 : index
    %10 = vector.load %arg5[%c0_8, %c0_9] : memref<16x128xf32, #tpu.memory_space<vmem>>, vector<16x128xf32>
    tpu.vector_store %arg5[%c0_8, %c0_9], %9 {strides = array<i32>} : memref<16x128xf32, #tpu.memory_space<vmem>>, vector<16x128xf32>,
    %c2_i32 = arith.constant 2 : i32
    %11 = arith.cmpi eq, %arg1, %c2_i32 : i32
    %12 = arith.extui %11 : i1 to i32
    %c0_i32_10 = arith.constant 0 : i32
    %13 = arith.cmpi ne, %12, %c0_i32_10 : i32
    scf.if %13 {
      %c0_11 = arith.constant 0 : index
      %c0_12 = arith.constant 0 : index
      %14 = vector.load %arg5[%c0_11, %c0_12] : memref<16x128xf32, #tpu.memory_space<vmem>>, vector<16x128xf32>
      %c0_13 = arith.constant 0 : index
      %c0_14 = arith.constant 0 : index
      %15 = vector.load %arg4[%c0_13, %c0_14] : memref<1x128xf32, #tpu.memory_space<vmem>>, vector<1x128xf32>
      %16 = vector.broadcast %15 : vector<1x128xf32> to vector<16x128xf32>
      %17 = arith.addf %14, %16 : vector<16x128xf32>
      %cst_15 = arith.constant 0.000000e+00 : f32
      %18 = vector.broadcast %cst_15 : f32 to vector<16x128xf32>
      %19 = arith.maximumf %17, %18 : vector<16x128xf32>
      %c0_16 = arith.constant 0 : index
      %c0_17 = arith.constant 0 : index
      %20 = vector.load %arg5[%c0_16, %c0_17] : memref<16x128xf32, #tpu.memory_space<vmem>>, vector<16x128xf32>
      tpu.vector_store %arg5[%c0_16, %c0_17], %19 {strides = array<i32>} : memref<16x128xf32, #tpu.memory_space<vmem>>, vector<16x128xf32>,
    } else {
    }
    return
  }
  func.func @transform_0(%arg0: i32, %arg1: i32) -> (i32, i32, i32) {
    %c0_i32 = arith.constant 0 : i32
    %c0_i32_0 = arith.constant 0 : i32
    return %arg1, %arg0, %c0_i32 : i32, i32, i32
  }
  func.func @transform_1(%arg0: i32, %arg1: i32) -> (i32, i32, i32) {
    %c0_i32 = arith.constant 0 : i32
    %c0_i32_0 = arith.constant 0 : i32
    %c0_i32_1 = arith.constant 0 : i32
    return %arg1, %c0_i32, %c0_i32_0 : i32, i32, i32
  }
  func.func @transform_2(%arg0: i32, %arg1: i32) -> (i32, i32) {
    %c0_i32 = arith.constant 0 : i32
    %c0_i32_0 = arith.constant 0 : i32
    %c0_i32_1 = arith.constant 0 : i32
    return %c0_i32, %c0_i32_0 : i32, i32
  }
  func.func @transform_3(%arg0: i32, %arg1: i32) -> (i32, i32) {
    %c0_i32 = arith.constant 0 : i32
    %c0_i32_0 = arith.constant 0 : i32
    return %arg0, %c0_i32 : i32, i32
  }
}

module attributes {stable_mosaic.version = 11 : i64} {
  func.func @_aggregate_kernel(%arg0: i32, %arg1: i32, %arg2: memref<1x16x16xbf16, #tpu.memory_space<vmem>>, %arg3: memref<1x16x128xbf16, #tpu.memory_space<vmem>>, %arg4: memref<1x128xf32, #tpu.memory_space<vmem>>, %arg5: memref<16x128xf32, #tpu.memory_space<vmem>>) attributes {dimension_semantics = [#tpu.dimension_semantics<parallel>, #tpu.dimension_semantics<arbitrary>], iteration_bounds = array<i64: 1, 3>, scalar_prefetch = 0 : i64, scratch_operands = 0 : i64, tpu.core_type = #tpu.core_type<tc>, window_params = [{transform_indices = @transform_0, window_bounds = array<i64: 1, 16, 16>}, {transform_indices = @transform_1, window_bounds = array<i64: 1, 16, 128>}, {pipeline_mode = #tpu.pipeline_mode<synchronous>, transform_indices = @transform_2, window_bounds = array<i64: 1, 128>}, {transform_indices = @transform_3, window_bounds = array<i64: 16, 128>}]} {
    %c0_i32 = arith.constant 0 : i32
    %0 = arith.cmpi eq, %arg1, %c0_i32 : i32
    %1 = arith.extui %0 : i1 to i32
    %c0_i32_0 = arith.constant 0 : i32
    %2 = arith.cmpi ne, %1, %c0_i32_0 : i32
    scf.if %2 {
      %cst_11 = arith.constant 0.000000e+00 : f32
      %14 = vector.broadcast %cst_11 : f32 to vector<16x128xf32>
      %c0_12 = arith.constant 0 : index
      %c0_13 = arith.constant 0 : index
      %15 = vector.load %arg5[%c0_12, %c0_13] : memref<16x128xf32, #tpu.memory_space<vmem>>, vector<16x128xf32>
      tpu.vector_store %arg5[%c0_12, %c0_13], %14 {strides = array<i32>} : memref<16x128xf32, #tpu.memory_space<vmem>>, vector<16x128xf32>,
    } else {
    }
    %c0 = arith.constant 0 : index
    %c0_1 = arith.constant 0 : index
    %3 = vector.load %arg5[%c0, %c0_1] : memref<16x128xf32, #tpu.memory_space<vmem>>, vector<16x128xf32>
    %c0_2 = arith.constant 0 : index
    %c0_3 = arith.constant 0 : index
    %c0_4 = arith.constant 0 : index
    %4 = vector.load %arg2[%c0_2, %c0_3, %c0_4] : memref<1x16x16xbf16, #tpu.memory_space<vmem>>, vector<1x16x16xbf16>
    %5 = vector.shape_cast %4 : vector<1x16x16xbf16> to vector<16x16xbf16>
    %c0_5 = arith.constant 0 : index
    %c0_6 = arith.constant 0 : index
    %c0_7 = arith.constant 0 : index
    %6 = vector.load %arg3[%c0_5, %c0_6, %c0_7] : memref<1x16x128xbf16, #tpu.memory_space<vmem>>, vector<1x16x128xbf16>
    %7 = vector.shape_cast %6 : vector<1x16x128xbf16> to vector<16x128xbf16>
    %cst = arith.constant dense<0.000000e+00> : vector<16x128xf32>
    %8 = tpu.matmul %5, %7, %cst {dimension_numbers = #tpu.dot_dimension_numbers<[1], [0], [0], [1], [0, 0, 1, 1], [], []>} : vector<16x16xbf16>, vector<16x128xbf16>, vector<16x128xf32> -> vector<16x128xf32>
    %9 = arith.addf %3, %8 : vector<16x128xf32>
    %c0_8 = arith.constant 0 : index
    %c0_9 = arith.constant 0 : index
    %10 = vector.load %arg5[%c0_8, %c0_9] : memref<16x128xf32, #tpu.memory_space<vmem>>, vector<16x128xf32>
    tpu.vector_store %arg5[%c0_8, %c0_9], %9 {strides = array<i32>} : memref<16x128xf32, #tpu.memory_space<vmem>>, vector<16x128xf32>,
    %c2_i32 = arith.constant 2 : i32
    %11 = arith.cmpi eq, %arg1, %c2_i32 : i32
    %12 = arith.extui %11 : i1 to i32
    %c0_i32_10 = arith.constant 0 : i32
    %13 = arith.cmpi ne, %12, %c0_i32_10 : i32
    scf.if %13 {
      %c0_11 = arith.constant 0 : index
      %c0_12 = arith.constant 0 : index
      %14 = vector.load %arg5[%c0_11, %c0_12] : memref<16x128xf32, #tpu.memory_space<vmem>>, vector<16x128xf32>
      %c0_13 = arith.constant 0 : index
      %c0_14 = arith.constant 0 : index
      %15 = vector.load %arg4[%c0_13, %c0_14] : memref<1x128xf32, #tpu.memory_space<vmem>>, vector<1x128xf32>
      %16 = vector.broadcast %15 : vector<1x128xf32> to vector<16x128xf32>
      %17 = arith.addf %14, %16 : vector<16x128xf32>
      %c0_15 = arith.constant 0 : index
      %c0_16 = arith.constant 0 : index
      %18 = vector.load %arg5[%c0_15, %c0_16] : memref<16x128xf32, #tpu.memory_space<vmem>>, vector<16x128xf32>
      tpu.vector_store %arg5[%c0_15, %c0_16], %17 {strides = array<i32>} : memref<16x128xf32, #tpu.memory_space<vmem>>, vector<16x128xf32>,
    } else {
    }
    return
  }
  func.func @transform_0(%arg0: i32, %arg1: i32) -> (i32, i32, i32) {
    %c0_i32 = arith.constant 0 : i32
    %c0_i32_0 = arith.constant 0 : i32
    return %arg1, %arg0, %c0_i32 : i32, i32, i32
  }
  func.func @transform_1(%arg0: i32, %arg1: i32) -> (i32, i32, i32) {
    %c0_i32 = arith.constant 0 : i32
    %c0_i32_0 = arith.constant 0 : i32
    %c0_i32_1 = arith.constant 0 : i32
    return %arg1, %c0_i32, %c0_i32_0 : i32, i32, i32
  }
  func.func @transform_2(%arg0: i32, %arg1: i32) -> (i32, i32) {
    %c0_i32 = arith.constant 0 : i32
    %c0_i32_0 = arith.constant 0 : i32
    %c0_i32_1 = arith.constant 0 : i32
    return %c0_i32, %c0_i32_0 : i32, i32
  }
  func.func @transform_3(%arg0: i32, %arg1: i32) -> (i32, i32) {
    %c0_i32 = arith.constant 0 : i32
    %c0_i32_0 = arith.constant 0 : i32
    return %arg0, %c0_i32 : i32, i32
  }
}

</mosaic_0001>

<llo_original>
// kernel: rgcn_forward.7
$region0: #{rgcn_forward.7}
  #allocation0 [shape = 'u32[]', space=smem, size = 0x4, offset = 0x4, fixed_abs, tag = 'smem constant byte address 0x4 - core index']
  #allocation1 [shape = 'u32[144,128]{1,0:T(1,128)}', space=vmem, size = 0x12000, scoped, tag = 'internal scratch']
  %s0 = inlined_call_operand.vmem [shape: bf16[3,16,16], index: 0, kind: input, shape index: {}]
  %s1 = inlined_call_operand.vmem [shape: bf16[3,16,128], index: 1, kind: input, shape index: {}]
  %s2 = inlined_call_operand.vmem [shape: f32[1,128], index: 2, kind: input, shape index: {}]
  %s3 = inlined_call_operand.vmem [shape: f32[16,128], index: 3, kind: output, shape index: {}]
  %s4 = sld [smem:[#allocation0]]
  $region53: #{rgcn_forward.7} parent=0
    _
  %s6 = ssub.s32 1, %s4
  %s7 = scalar_select 0, %s6, %s4
  loop: start=0, step=1, limit=5
  $region2: #{rgcn_forward.7} parent=0 // loop_pre_header
    _
  $region3: #{rgcn_forward.7} parent=0 // loop_header
    %s9 = sphi 0, %s13
    %p10 = scmp.ge.s32.totalorder %s9, 5
    %s16 = sphi 0, %s28
    %s17 = sphi 0, %s24
    %s18 = sphi 0, %s16
    %s19 = sphi 0, %s17
    %s20 = sphi 0, %s18
    %s21 = sphi 0, %s19
    %s33 = sphi 0, %s35
    %s36 = sphi 0, %s33
    %s37 = sphi 0, %s36
    %s53 = sphi 0, %s37
    %s59 = sphi 0, %s61
    %s62 = sphi 0, %s59
    %s63 = sphi 0, %s62
    %s79 = sphi 0, %s63
    %s83 = sphi 0, %s83
    %s85 = sphi 0, %s83
    %s86 = sphi 0, %s85
    %s100 = sphi 0, %s86
    %s106 = sphi 0, %s108
    %s109 = sphi 0, %s106
    %s110 = sphi 0, %s109
    %s126 = sphi 0, %s110
  $region4: #{rgcn_forward.7} parent=0 // loop_header_branch
    %12 = sbr.rel (%p10) target = $region8
  $region5: #{rgcn_forward.7} parent=0 // loop_body
    %s14 = ssub.s32 %s9, 1
    %s15 = ssub.s32 %s9, 2
    %s22 = sadd.s32 1, %s17
    %p23 = scmp.ge.s32.totalorder %s22, 3
    %s24 = scalar_select %p23, 0, %s22
    %s25 = sadd.s32 1, %s16
    %s26 = scalar_select %p23, %s25, %s16
    %p27 = scmp.ge.s32.totalorder %s26, 1
    %s28 = scalar_select %p27, 0, %s26
    %s29 = ssub.s32 %s17, %s24
    %s30 = ssub.s32 %s16, %s28
    %s31 = sor.u32 %s29, %s30
    %p32 = scmp.eq.s32.totalorder %s31, 0
    %s34 = sadd.s32 %s33, 1
    %s35 = scalar_select %p32, %s33, %s34
    %p38 = pneg %p32
    %p39 = scmp.eq.s32.totalorder %s9, 2
    %p40 = por %p38, %p39
    %p41 = scmp.ne.s32.totalorder %s33, %s36
    %p42 = scmp.eq.s32.totalorder %s9, 0
    %p43 = por %p41, %p42
    %p44 = scmp.ne.s32.totalorder %s33, %s36
    %p45 = scmp.eq.s32.totalorder %s14, 2
    %p46 = por %p44, %p45
    %p47 = scmp.ne.s32.totalorder %s36, %s37
    %p48 = scmp.eq.s32.totalorder %s14, 0
    %p49 = por %p47, %p48
    %p50 = scmp.ne.s32.totalorder %s36, %s37
    %p51 = scmp.eq.s32.totalorder %s15, 2
    %p52 = por %p50, %p51
    %p54 = scmp.ne.s32.totalorder %s37, %s53
    %p55 = scmp.eq.s32.totalorder %s15, 0
    %p56 = por %p54, %p55
    %s57 = ssub.s32 %s17, %s24
    %p58 = scmp.eq.s32.totalorder %s57, 0
    %s60 = sadd.s32 %s59, 1
    %s61 = scalar_select %p58, %s59, %s60
    %p64 = pneg %p58
    %p65 = scmp.eq.s32.totalorder %s9, 2
    %p66 = por %p64, %p65
    %p67 = scmp.ne.s32.totalorder %s59, %s62
    %p68 = scmp.eq.s32.totalorder %s9, 0
    %p69 = por %p67, %p68
    %p70 = scmp.ne.s32.totalorder %s59, %s62
    %p71 = scmp.eq.s32.totalorder %s14, 2
    %p72 = por %p70, %p71
    %p73 = scmp.ne.s32.totalorder %s62, %s63
    %p74 = scmp.eq.s32.totalorder %s14, 0
    %p75 = por %p73, %p74
    %p76 = scmp.ne.s32.totalorder %s62, %s63
    %p77 = scmp.eq.s32.totalorder %s15, 2
    %p78 = por %p76, %p77
    %p80 = scmp.ne.s32.totalorder %s63, %s79
    %p81 = scmp.eq.s32.totalorder %s15, 0
    %p82 = por %p80, %p81
    %s84 = sadd.s32 %s83, 1
    %p87 = scmp.eq.s32.totalorder %s9, 2
    %p88 = scmp.ne.s32.totalorder %s83, %s85
    %p89 = scmp.eq.s32.totalorder %s9, 0
    %p90 = por %p88, %p89
    %p91 = scmp.ne.s32.totalorder %s83, %s85
    %p92 = scmp.eq.s32.totalorder %s14, 2
    %p93 = por %p91, %p92
    %p94 = scmp.ne.s32.totalorder %s85, %s86
    %p95 = scmp.eq.s32.totalorder %s14, 0
    %p96 = por %p94, %p95
    %p97 = scmp.ne.s32.totalorder %s85, %s86
    %p98 = scmp.eq.s32.totalorder %s15, 2
    %p99 = por %p97, %p98
    %p101 = scmp.ne.s32.totalorder %s86, %s100
    %p102 = scmp.eq.s32.totalorder %s15, 0
    %p103 = por %p101, %p102
    %s104 = ssub.s32 %s16, %s28
    %p105 = scmp.eq.s32.totalorder %s104, 0
    %s107 = sadd.s32 %s106, 1
    %s108 = scalar_select %p105, %s106, %s107
    %p111 = pneg %p105
    %p112 = scmp.eq.s32.totalorder %s9, 2
    %p113 = por %p111, %p112
    %p114 = scmp.ne.s32.totalorder %s106, %s109
    %p115 = scmp.eq.s32.totalorder %s9, 0
    %p116 = por %p114, %p115
    %p117 = scmp.ne.s32.totalorder %s106, %s109
    %p118 = scmp.eq.s32.totalorder %s14, 2
    %p119 = por %p117, %p118
    %p120 = scmp.ne.s32.totalorder %s109, %s110
    %p121 = scmp.eq.s32.totalorder %s14, 0
    %p122 = por %p120, %p121
    %p123 = scmp.ne.s32.totalorder %s109, %s110
    %p124 = scmp.eq.s32.totalorder %s15, 2
    %p125 = por %p123, %p124
    %p127 = scmp.ne.s32.totalorder %s110, %s126
    %p128 = scmp.eq.s32.totalorder %s15, 0
    %p129 = por %p127, %p128
    %p130 = scmp.le.s32.totalorder 1, %s9
    %p131 = scmp.lt.s32.totalorder %s9, 4
    %p132 = pnand %p130, %p131
    %p133 = pneg %p132
    // Predicated region
    $region9: #{rgcn_forward.7} parent=5 // pred_check
      _
    $region10: #{rgcn_forward.7} parent=5 // pred_check_branch
      %135 = sbr.rel (%p132) target = $region12
    $region11: #{rgcn_forward.7} parent=5 // pred_region
      %s136 = ssub.s32 %s9, 1
      // Predicated region
      $region13: #{rgcn_forward.7} parent=11 // pred_check
        %p137 = pneg %p96
      $region14: #{rgcn_forward.7} parent=11 // pred_check_branch
        %139 = sbr.rel (%p137) target = $region16
      $region15: #{rgcn_forward.7} parent=11 // pred_region
        _
      $region16: #{rgcn_forward.7} parent=11 // pred_fallthru
        _
    $region12: #{rgcn_forward.7} parent=5 // pred_fallthru
      _
    %p140 = scmp.lt.s32.totalorder %s9, 3
    // Predicated region
    $region17: #{rgcn_forward.7} parent=5 // pred_check
      %p141 = pneg %p140
    $region18: #{rgcn_forward.7} parent=5 // pred_check_branch
      %143 = sbr.rel (%p141) target = $region20
    $region19: #{rgcn_forward.7} parent=5 // pred_region
      // Predicated region
      $region21: #{rgcn_forward.7} parent=19 // pred_check
        %p144 = pneg %p43
      $region22: #{rgcn_forward.7} parent=19 // pred_check_branch
        %146 = sbr.rel (%p144) target = $region24
      $region23: #{rgcn_forward.7} parent=19 // pred_region
        %s147 = smul.u32 2, %s16
        %p148 = scmp.lt.s32.totalorder %s17, 2
        %s149 = scalar_select %p148, %s17, 2
        %p150 = scmp.lt.s32.totalorder %s147, 1
        %s151 = scalar_select %p150, %s147, 1
        %s152 = smul.addr %s149, 2
        %s153 = sadd.s32 %s151, %s152
        %s154 = smul.addr %s153, 4
        %s155 = scalar_lea.vmem %s0, %s154
        %s156 = smul.u32 2, %s16
      $region24: #{rgcn_forward.7} parent=19 // pred_fallthru
        _
      // Predicated region
      $region25: #{rgcn_forward.7} parent=19 // pred_check
        %p157 = pneg %p69
      $region26: #{rgcn_forward.7} parent=19 // pred_check_branch
        %159 = sbr.rel (%p157) target = $region28
      $region27: #{rgcn_forward.7} parent=19 // pred_region
        %p160 = scmp.lt.s32.totalorder %s17, 2
        %s161 = scalar_select %p160, %s17, 2
        %s162 = smul.addr %s161, 2
        %s163 = smul.addr %s162, 4
        %s164 = scalar_lea.vmem %s1, %s163
      $region28: #{rgcn_forward.7} parent=19 // pred_fallthru
        _
    $region20: #{rgcn_forward.7} parent=5 // pred_fallthru
      _
    %p165 = scmp.le.s32.totalorder 1, %s9
    %p166 = scmp.lt.s32.totalorder %s9, 4
    %p167 = pnand %p165, %p166
    %p168 = pneg %p167
    // Predicated region
    $region29: #{rgcn_forward.7} parent=5 // pred_check
      _
    $region30: #{rgcn_forward.7} parent=5 // pred_check_branch
      %170 = sbr.rel (%p167) target = $region32
    $region31: #{rgcn_forward.7} parent=5 // pred_region
      %s171 = ssub.s32 %s9, 1
      %s172 = smul.u32 2, %s18
      %p173 = scmp.lt.s32.totalorder %s19, 2
      %s174 = scalar_select %p173, %s19, 2
      %p175 = scmp.lt.s32.totalorder %s172, 1
      %s176 = scalar_select %p175, %s172, 1
      %s177 = smul.addr %s174, 2
      %s178 = sadd.s32 %s176, %s177
      %s179 = smul.addr %s178, 4
      %s180 = scalar_lea.vmem %s0, %s179
      %p181 = pneg %p49
      %p182 = pneg %p46
      %p183 = scmp.lt.s32.totalorder %s19, 2
      %s184 = scalar_select %p183, %s19, 2
      %s185 = smul.addr %s184, 2
      %s186 = smul.addr %s185, 4
      %s187 = scalar_lea.vmem %s1, %s186
      %p188 = pneg %p75
      %p189 = pneg %p72
      %p190 = pneg %p96
      %p191 = pneg %p93
      %p192 = pneg %p122
      %p193 = pneg %p119
      %s194 = smul.u32 2, %s18
      %p195 = scmp.lt.s32.totalorder %s194, 1
      %s196 = scalar_select %p195, %s194, 1
      %s197 = smul.addr %s196, 8
      %s198 = scalar_lea.vmem %s3, %s197
      %s199 = smul.u32 2, %s18
      %p200 = scmp.lt.s32.totalorder %s19, 2
      %s201 = scalar_select %p200, %s19, 2
      %p202 = scmp.lt.s32.totalorder %s199, 1
      %s203 = scalar_select %p202, %s199, 1
      %s204 = smul.addr %s201, 2
      %s205 = sadd.s32 %s203, %s204
      %s206 = smul.addr %s205, 4
      %s207 = scalar_lea.vmem %s0, %s206
      %s208 = smul.u32 2, %s18
      %p209 = scmp.lt.s32.totalorder %s19, 2
      %s210 = scalar_select %p209, %s19, 2
      %s211 = smul.addr %s210, 2
      %s212 = smul.addr %s211, 4
      %s213 = scalar_lea.vmem %s1, %s212
      %s214 = smul.u32 2, %s18
      %p215 = scmp.lt.s32.totalorder %s214, 1
      %s216 = scalar_select %p215, %s214, 1
      %s217 = smul.addr %s216, 8
      %s218 = scalar_lea.vmem %s3, %s217
      %s219 = smul.u32 2, %s18
      %p221 = scmp.eq.s32.totalorder %s19, 0
      // Predicated region
      $region33: #{rgcn_forward.7} parent=31 // pred_check
        %p222 = pneg %p221
      $region34: #{rgcn_forward.7} parent=31 // pred_check_branch
        %224 = sbr.rel (%p222) target = $region36
      $region35: #{rgcn_forward.7} parent=31 // pred_region
        %225 = vst [vmem:[%s218] sm:$0xff] 0.0
        %226 = vst [vmem:[%s218 + $0x8] sm:$0xff] 0.0
      $region36: #{rgcn_forward.7} parent=31 // pred_fallthru
        _
      %v227 = vld [vmem:[%s218] sm:$0xff]
      %v228 = vld [vmem:[%s218 + $0x8] sm:$0xff]
      %v229 = vld [vmem:[%s207] sm:$0xf]
      %v230 = vld [vmem:[%s207 + $0x4] sm:$0xf]
      %v231 = vld [vmem:[%s213] sm:$0xf]
      %v232 = vld [vmem:[%s213 + $0x4] sm:$0xf]
      %v235 = vunpack.c.l.b16 %v229
      %v236 = vunpack.c.l.b16 %v230
      %v237 = vpack.c.b16 %v236, %v235
      %v240 = vunpack.c.l.b16 %v231
      %v241 = vunpack.c.l.b16 %v232
      %v242 = vpack.c.b16 %v241, %v240
      %vm244 = vcmask 130048
      %v246 = vsel %vm244, %v237, 0
      %248 = vmatprep.subr.bf16.mxu0 0
      %249 = vmatpush1.bf16.msra.mxu0 %v242
      %250 = vmatprep.subr.bf16.mxu0 0
      %251 = vmatpush1.bf16.msra.mxu0 0
      %252 = vmatprep.subr.bf16.mxu0 0
      %253 = vmatpush1.bf16.msra.mxu0 0
      %254 = vmatprep.subr.bf16.mxu0 0
      %255 = vmatpush1.bf16.msra.mxu0 0
      %256 = vmatprep.subr.bf16.mxu0 0
      %257 = vmatpush1.bf16.msra.mxu0 0
      %258 = vmatprep.subr.bf16.mxu0 0
      %259 = vmatpush1.bf16.msra.mxu0 0
      %260 = vmatprep.subr.bf16.mxu0 0
      %261 = vmatpush1.bf16.msra.mxu0 0
      %262 = vmatprep.subr.bf16.mxu0 0
      %263 = vmatpush1.bf16.msra.mxu0 0
      %264 = vmatprep.subr.bf16.mxu0 0
      %265 = vmatpush1.bf16.msra.mxu0 0
      %266 = vmatprep.subr.bf16.mxu0 0
      %267 = vmatpush1.bf16.msra.mxu0 0
      %268 = vmatprep.subr.bf16.mxu0 0
      %269 = vmatpush1.bf16.msra.mxu0 0
      %270 = vmatprep.subr.bf16.mxu0 0
      %271 = vmatpush1.bf16.msra.mxu0 0
      %272 = vmatprep.subr.bf16.mxu0 0
      %273 = vmatpush1.bf16.msra.mxu0 0
      %274 = vmatprep.subr.bf16.mxu0 0
      %275 = vmatpush1.bf16.msra.mxu0 0
      %276 = vmatprep.subr.bf16.mxu0 0
      %277 = vmatpush1.bf16.msra.mxu0 0
      %278 = vmatprep.subr.bf16.mxu0 0
      %279 = vmatpush1.bf16.msra.mxu0 0
      %280 = vmatprep.mubr.bf16.mxu0 0
      %281 = vmatmul.mubr.bf16.gmra.mrb[0].mxu0 %v246
      %v282 = vpop.f32.mrb[0].mxu0
      %v283 = vadd.f32 0.0, %v282
      %v284 = vpop.f32.mrb[0].mxu0
      %v285 = vpop.f32.mrb[0].mxu0
      %v286 = vadd.f32 0.0, %v285
      %v287 = vpop.f32.mrb[0].mxu0
      %288 = vdwg.mxu0
      %v289 = vadd.f32 %v227, %v283
      %v290 = vadd.f32 %v228, %v286
      %291 = vst [vmem:[%s218] sm:$0xff] %v289
      %292 = vst [vmem:[%s218 + $0x8] sm:$0xff] %v290
      %p293 = scmp.eq.s32.totalorder %s19, 2
      // Predicated region
      $region37: #{rgcn_forward.7} parent=31 // pred_check
        %p294 = pneg %p293
      $region38: #{rgcn_forward.7} parent=31 // pred_check_branch
        %296 = sbr.rel (%p294) target = $region40
      $region39: #{rgcn_forward.7} parent=31 // pred_region
        %v297 = vld [vmem:[%s218] sm:$0xff]
        %v298 = vld [vmem:[%s218 + $0x8] sm:$0xff]
        %v299 = vld [vmem:[%s2] sm:$0x1]
        %v301 = vlaneseq
        %v302 = vshrl.u32 %v301, 7
        %v303 = vsub.s32 0, %v302
        %v304 = vrot.slane %v299, %v303
        %v306 = vadd.f32 %v297, %v304
        %v307 = vadd.f32 %v298, %v304
        %v308 = vmax.f32 %v306, 0.0
        %v309 = vmax.f32 %v307, 0.0
        %310 = vst [vmem:[%s218] sm:$0xff] %v308
        %311 = vst [vmem:[%s218 + $0x8] sm:$0xff] %v309
      $region40: #{rgcn_forward.7} parent=31 // pred_fallthru
        _
      %s312 = smul.u32 2, %s18
      %p313 = scmp.lt.s32.totalorder %s312, 1
      %s314 = scalar_select %p313, %s312, 1
      %s315 = smul.addr %s314, 8
      %s316 = scalar_lea.vmem %s3, %s315
      // Predicated region
      $region41: #{rgcn_forward.7} parent=31 // pred_check
        %p317 = pneg %p119
      $region42: #{rgcn_forward.7} parent=31 // pred_check_branch
        %319 = sbr.rel (%p317) target = $region44
      $region43: #{rgcn_forward.7} parent=31 // pred_region
        %s320 = smul.u32 2, %s18
      $region44: #{rgcn_forward.7} parent=31 // pred_fallthru
        _
      // Predicated region
      $region45: #{rgcn_forward.7} parent=31 // pred_check
        %p321 = pneg %p119
      $region46: #{rgcn_forward.7} parent=31 // pred_check_branch
        %323 = sbr.rel (%p321) target = $region48
      $region47: #{rgcn_forward.7} parent=31 // pred_region
        %s324 = smul.u32 2, %s18
        %p325 = scmp.lt.s32.totalorder %s324, 1
        %s326 = scalar_select %p325, %s324, 1
        %s327 = smul.addr %s326, 8
        %s328 = scalar_lea.vmem %s3, %s327
      $region48: #{rgcn_forward.7} parent=31 // pred_fallthru
        _
    $region32: #{rgcn_forward.7} parent=5 // pred_fallthru
      _
    %p329 = scmp.le.s32.totalorder 2, %s9
    // Predicated region
    $region49: #{rgcn_forward.7} parent=5 // pred_check
      %p330 = pneg %p329
    $region50: #{rgcn_forward.7} parent=5 // pred_check_branch
      %332 = sbr.rel (%p330) target = $region52
    $region51: #{rgcn_forward.7} parent=5 // pred_region
      %s333 = ssub.s32 %s9, 2
    $region52: #{rgcn_forward.7} parent=5 // pred_fallthru
      _
  $region6: #{rgcn_forward.7} parent=0 // loop_footer
    %s13 = sadd.s32 1, %s9
  $region7: #{rgcn_forward.7} parent=0 // loop_footer_branch
    %8 = sbr.rel target = $region3
  $region8: #{rgcn_forward.7} parent=0 // loop_exit
    _

// kernel: rgcn_forward.6
$region0: #{rgcn_forward.6}
  #allocation0 [shape = 'u32[]', space=smem, size = 0x4, offset = 0x4, fixed_abs, tag = 'smem constant byte address 0x4 - core index']
  #allocation1 [shape = 'u32[144,128]{1,0:T(1,128)}', space=vmem, size = 0x12000, scoped, tag = 'internal scratch']
  %s0 = inlined_call_operand.vmem [shape: bf16[16,128], index: 0, kind: input, shape index: {}]
  %s1 = inlined_call_operand.vmem [shape: bf16[3,128,128], index: 1, kind: input, shape index: {}]
  %s2 = inlined_call_operand.vmem [shape: bf16[3,16,128], index: 2, kind: output, shape index: {}]
  %s3 = sld [smem:[#allocation0]]
  $region41: #{rgcn_forward.6} parent=0
    _
  %s5 = ssub.s32 1, %s3
  %s6 = scalar_select 0, %s5, %s3
  loop: start=0, step=1, limit=5
  $region2: #{rgcn_forward.6} parent=0 // loop_pre_header
    _
  $region3: #{rgcn_forward.6} parent=0 // loop_header
    %s8 = sphi 0, %s12
    %p9 = scmp.ge.s32.totalorder %s8, 5
    %s15 = sphi 0, %s27
    %s16 = sphi 0, %s23
    %s17 = sphi 0, %s15
    %s18 = sphi 0, %s16
    %s19 = sphi 0, %s17
    %s20 = sphi 0, %s18
    %s30 = sphi 0, %s32
    %s33 = sphi 0, %s30
    %s34 = sphi 0, %s33
    %s50 = sphi 0, %s34
    %s56 = sphi 0, %s58
    %s59 = sphi 0, %s56
    %s60 = sphi 0, %s59
    %s76 = sphi 0, %s60
    %s84 = sphi 0, %s86
    %s87 = sphi 0, %s84
    %s88 = sphi 0, %s87
    %s104 = sphi 0, %s88
  $region4: #{rgcn_forward.6} parent=0 // loop_header_branch
    %11 = sbr.rel (%p9) target = $region8
  $region5: #{rgcn_forward.6} parent=0 // loop_body
    %s13 = ssub.s32 %s8, 1
    %s14 = ssub.s32 %s8, 2
    %s21 = sadd.s32 1, %s16
    %p22 = scmp.ge.s32.totalorder %s21, 1
    %s23 = scalar_select %p22, 0, %s21
    %s24 = sadd.s32 1, %s15
    %s25 = scalar_select %p22, %s24, %s15
    %p26 = scmp.ge.s32.totalorder %s25, 3
    %s27 = scalar_select %p26, 0, %s25
    %s28 = ssub.s32 %s16, %s23
    %p29 = scmp.eq.s32.totalorder %s28, 0
    %s31 = sadd.s32 %s30, 1
    %s32 = scalar_select %p29, %s30, %s31
    %p35 = pneg %p29
    %p36 = scmp.eq.s32.totalorder %s8, 2
    %p37 = por %p35, %p36
    %p38 = scmp.ne.s32.totalorder %s30, %s33
    %p39 = scmp.eq.s32.totalorder %s8, 0
    %p40 = por %p38, %p39
    %p41 = scmp.ne.s32.totalorder %s30, %s33
    %p42 = scmp.eq.s32.totalorder %s13, 2
    %p43 = por %p41, %p42
    %p44 = scmp.ne.s32.totalorder %s33, %s34
    %p45 = scmp.eq.s32.totalorder %s13, 0
    %p46 = por %p44, %p45
    %p47 = scmp.ne.s32.totalorder %s33, %s34
    %p48 = scmp.eq.s32.totalorder %s14, 2
    %p49 = por %p47, %p48
    %p51 = scmp.ne.s32.totalorder %s34, %s50
    %p52 = scmp.eq.s32.totalorder %s14, 0
    %p53 = por %p51, %p52
    %s54 = ssub.s32 %s15, %s27
    %p55 = scmp.eq.s32.totalorder %s54, 0
    %s57 = sadd.s32 %s56, 1
    %s58 = scalar_select %p55, %s56, %s57
    %p61 = pneg %p55
    %p62 = scmp.eq.s32.totalorder %s8, 2
    %p63 = por %p61, %p62
    %p64 = scmp.ne.s32.totalorder %s56, %s59
    %p65 = scmp.eq.s32.totalorder %s8, 0
    %p66 = por %p64, %p65
    %p67 = scmp.ne.s32.totalorder %s56, %s59
    %p68 = scmp.eq.s32.totalorder %s13, 2
    %p69 = por %p67, %p68
    %p70 = scmp.ne.s32.totalorder %s59, %s60
    %p71 = scmp.eq.s32.totalorder %s13, 0
    %p72 = por %p70, %p71
    %p73 = scmp.ne.s32.totalorder %s59, %s60
    %p74 = scmp.eq.s32.totalorder %s14, 2
    %p75 = por %p73, %p74
    %p77 = scmp.ne.s32.totalorder %s60, %s76
    %p78 = scmp.eq.s32.totalorder %s14, 0
    %p79 = por %p77, %p78
    %s80 = ssub.s32 %s15, %s27
    %s81 = ssub.s32 %s16, %s23
    %s82 = sor.u32 %s80, %s81
    %p83 = scmp.eq.s32.totalorder %s82, 0
    %s85 = sadd.s32 %s84, 1
    %s86 = scalar_select %p83, %s84, %s85
    %p89 = pneg %p83
    %p90 = scmp.eq.s32.totalorder %s8, 2
    %p91 = por %p89, %p90
    %p92 = scmp.ne.s32.totalorder %s84, %s87
    %p93 = scmp.eq.s32.totalorder %s8, 0
    %p94 = por %p92, %p93
    %p95 = scmp.ne.s32.totalorder %s84, %s87
    %p96 = scmp.eq.s32.totalorder %s13, 2
    %p97 = por %p95, %p96
    %p98 = scmp.ne.s32.totalorder %s87, %s88
    %p99 = scmp.eq.s32.totalorder %s13, 0
    %p100 = por %p98, %p99
    %p101 = scmp.ne.s32.totalorder %s87, %s88
    %p102 = scmp.eq.s32.totalorder %s14, 2
    %p103 = por %p101, %p102
    %p105 = scmp.ne.s32.totalorder %s88, %s104
    %p106 = scmp.eq.s32.totalorder %s14, 0
    %p107 = por %p105, %p106
    %p108 = scmp.le.s32.totalorder 1, %s8
    %p109 = scmp.lt.s32.totalorder %s8, 4
    %p110 = pnand %p108, %p109
    %p111 = pneg %p110
    // Predicated region
    $region9: #{rgcn_forward.6} parent=5 // pred_check
      _
    $region10: #{rgcn_forward.6} parent=5 // pred_check_branch
      %113 = sbr.rel (%p110) target = $region12
    $region11: #{rgcn_forward.6} parent=5 // pred_region
      %s114 = ssub.s32 %s8, 1
      // Predicated region
      $region13: #{rgcn_forward.6} parent=11 // pred_check
        %p115 = pneg %p46
      $region14: #{rgcn_forward.6} parent=11 // pred_check_branch
        %117 = sbr.rel (%p115) target = $region16
      $region15: #{rgcn_forward.6} parent=11 // pred_region
        %s118 = smul.u32 2, %s18
        %p119 = scmp.lt.s32.totalorder %s118, 1
        %s120 = scalar_select %p119, %s118, 1
        %s121 = smul.addr %s120, 4
        %s122 = scalar_lea.vmem %s0, %s121
        %s123 = smul.u32 2, %s18
      $region16: #{rgcn_forward.6} parent=11 // pred_fallthru
        _
    $region12: #{rgcn_forward.6} parent=5 // pred_fallthru
      _
    %p124 = scmp.lt.s32.totalorder %s8, 3
    // Predicated region
    $region17: #{rgcn_forward.6} parent=5 // pred_check
      %p125 = pneg %p124
    $region18: #{rgcn_forward.6} parent=5 // pred_check_branch
      %127 = sbr.rel (%p125) target = $region20
    $region19: #{rgcn_forward.6} parent=5 // pred_region
      // Predicated region
      $region21: #{rgcn_forward.6} parent=19 // pred_check
        %p128 = pneg %p66
      $region22: #{rgcn_forward.6} parent=19 // pred_check_branch
        %130 = sbr.rel (%p128) target = $region24
      $region23: #{rgcn_forward.6} parent=19 // pred_region
        %p131 = scmp.lt.s32.totalorder %s15, 2
        %s132 = scalar_select %p131, %s15, 2
        %s133 = smul.addr %s132, 16
        %s134 = smul.addr %s133, 4
        %s135 = scalar_lea.vmem %s1, %s134
      $region24: #{rgcn_forward.6} parent=19 // pred_fallthru
        _
    $region20: #{rgcn_forward.6} parent=5 // pred_fallthru
      _
    %p136 = scmp.le.s32.totalorder 1, %s8
    %p137 = scmp.lt.s32.totalorder %s8, 4
    %p138 = pnand %p136, %p137
    %p139 = pneg %p138
    // Predicated region
    $region25: #{rgcn_forward.6} parent=5 // pred_check
      _
    $region26: #{rgcn_forward.6} parent=5 // pred_check_branch
      %141 = sbr.rel (%p138) target = $region28
    $region27: #{rgcn_forward.6} parent=5 // pred_region
      %s142 = ssub.s32 %s8, 1
      %s143 = smul.u32 2, %s18
      %p144 = scmp.lt.s32.totalorder %s143, 1
      %s145 = scalar_select %p144, %s143, 1
      %s146 = smul.addr %s145, 4
      %s147 = scalar_lea.vmem %s0, %s146
      %p148 = pneg %p46
      %p149 = pneg %p43
      %p150 = scmp.lt.s32.totalorder %s17, 2
      %s151 = scalar_select %p150, %s17, 2
      %s152 = smul.addr %s151, 16
      %s153 = smul.addr %s152, 4
      %s154 = scalar_lea.vmem %s1, %s153
      %p155 = pneg %p72
      %p156 = pneg %p69
      %p157 = pneg %p100
      %p158 = pneg %p97
      %s159 = smul.u32 2, %s18
      %p160 = scmp.lt.s32.totalorder %s17, 2
      %s161 = scalar_select %p160, %s17, 2
      %p162 = scmp.lt.s32.totalorder %s159, 1
      %s163 = scalar_select %p162, %s159, 1
      %s164 = smul.addr %s161, 2
      %s165 = sadd.s32 %s163, %s164
      %s166 = smul.addr %s165, 4
      %s167 = scalar_lea.vmem %s2, %s166
      %s168 = smul.u32 2, %s18
      %p169 = scmp.lt.s32.totalorder %s168, 1
      %s170 = scalar_select %p169, %s168, 1
      %s171 = smul.addr %s170, 4
      %s172 = scalar_lea.vmem %s0, %s171
      %s173 = smul.u32 2, %s18
      %p174 = scmp.lt.s32.totalorder %s17, 2
      %s175 = scalar_select %p174, %s17, 2
      %s176 = smul.addr %s175, 16
      %s177 = smul.addr %s176, 4
      %s178 = scalar_lea.vmem %s1, %s177
      %s179 = smul.u32 2, %s18
      %p180 = scmp.lt.s32.totalorder %s17, 2
      %s181 = scalar_select %p180, %s17, 2
      %p182 = scmp.lt.s32.totalorder %s179, 1
      %s183 = scalar_select %p182, %s179, 1
      %s184 = smul.addr %s181, 2
      %s185 = sadd.s32 %s183, %s184
      %s186 = smul.addr %s185, 4
      %s187 = scalar_lea.vmem %s2, %s186
      %s188 = smul.u32 2, %s18
      %v190 = vld [vmem:[%s172] sm:$0xf]
      %v191 = vld [vmem:[%s172 + $0x4] sm:$0xf]
      %v192 = vld [vmem:[%s178] sm:$0xf]
      %v193 = vld [vmem:[%s178 + $0x4] sm:$0xf]
      %v194 = vld [vmem:[%s178 + $0x8] sm:$0xf]
      %v195 = vld [vmem:[%s178 + $0xc] sm:$0xf]
      %v196 = vld [vmem:[%s178 + $0x10] sm:$0xf]
      %v197 = vld [vmem:[%s178 + $0x14] sm:$0xf]
      %v198 = vld [vmem:[%s178 + $0x18] sm:$0xf]
      %v199 = vld [vmem:[%s178 + $0x1c] sm:$0xf]
      %v200 = vld [vmem:[%s178 + $0x20] sm:$0xf]
      %v201 = vld [vmem:[%s178 + $0x24] sm:$0xf]
      %v202 = vld [vmem:[%s178 + $0x28] sm:$0xf]
      %v203 = vld [vmem:[%s178 + $0x2c] sm:$0xf]
      %v204 = vld [vmem:[%s178 + $0x30] sm:$0xf]
      %v205 = vld [vmem:[%s178 + $0x34] sm:$0xf]
      %v206 = vld [vmem:[%s178 + $0x38] sm:$0xf]
      %v207 = vld [vmem:[%s178 + $0x3c] sm:$0xf]
      %v210 = vunpack.c.l.b16 %v190
      %v211 = vunpack.c.l.b16 %v191
      %v212 = vpack.c.b16 %v211, %v210
      %v230 = vunpack.c.l.b16 %v192
      %v231 = vunpack.c.l.b16 %v193
      %v232 = vunpack.c.l.b16 %v194
      %v233 = vunpack.c.l.b16 %v195
      %v234 = vunpack.c.l.b16 %v196
      %v235 = vunpack.c.l.b16 %v197
      %v236 = vunpack.c.l.b16 %v198
      %v237 = vunpack.c.l.b16 %v199
      %v238 = vunpack.c.l.b16 %v200
      %v239 = vunpack.c.l.b16 %v201
      %v240 = vunpack.c.l.b16 %v202
      %v241 = vunpack.c.l.b16 %v203
      %v242 = vunpack.c.l.b16 %v204
      %v243 = vunpack.c.l.b16 %v205
      %v244 = vunpack.c.l.b16 %v206
      %v245 = vunpack.c.l.b16 %v207
      %v246 = vpack.c.b16 %v231, %v230
      %v247 = vpack.c.b16 %v233, %v232
      %v248 = vpack.c.b16 %v235, %v234
      %v249 = vpack.c.b16 %v237, %v236
      %v250 = vpack.c.b16 %v239, %v238
      %v251 = vpack.c.b16 %v241, %v240
      %v252 = vpack.c.b16 %v243, %v242
      %v253 = vpack.c.b16 %v245, %v244
      %262 = vmatprep.subr.bf16.mxu0 0
      %263 = vmatpush1.bf16.msra.mxu0 %v246
      %264 = vmatprep.subr.bf16.mxu0 0
      %265 = vmatpush1.bf16.msra.mxu0 %v247
      %266 = vmatprep.subr.bf16.mxu0 0
      %267 = vmatpush1.bf16.msra.mxu0 %v248
      %268 = vmatprep.subr.bf16.mxu0 0
      %269 = vmatpush1.bf16.msra.mxu0 %v249
      %270 = vmatprep.subr.bf16.mxu0 0
      %271 = vmatpush1.bf16.msra.mxu0 %v250
      %272 = vmatprep.subr.bf16.mxu0 0
      %273 = vmatpush1.bf16.msra.mxu0 %v251
      %274 = vmatprep.subr.bf16.mxu0 0
      %275 = vmatpush1.bf16.msra.mxu0 %v252
      %276 = vmatprep.subr.bf16.mxu0 0
      %277 = vmatpush1.bf16.msra.mxu0 %v253
      %278 = vmatprep.subr.bf16.mxu0 0
      %279 = vmatpush1.bf16.msra.mxu0 0
      %280 = vmatprep.subr.bf16.mxu0 0
      %281 = vmatpush1.bf16.msra.mxu0 0
      %282 = vmatprep.subr.bf16.mxu0 0
      %283 = vmatpush1.bf16.msra.mxu0 0
      %284 = vmatprep.subr.bf16.mxu0 0
      %285 = vmatpush1.bf16.msra.mxu0 0
      %286 = vmatprep.subr.bf16.mxu0 0
      %287 = vmatpush1.bf16.msra.mxu0 0
      %288 = vmatprep.subr.bf16.mxu0 0
      %289 = vmatpush1.bf16.msra.mxu0 0
      %290 = vmatprep.subr.bf16.mxu0 0
      %291 = vmatpush1.bf16.msra.mxu0 0
      %292 = vmatprep.subr.bf16.mxu0 0
      %293 = vmatpush1.bf16.msra.mxu0 0
      %294 = vmatprep.mubr.bf16.mxu0 0
      %295 = vmatmul.mubr.bf16.gmra.mrb[0].mxu0 %v212
      %v296 = vpop.f32.mrb[0].mxu0
      %v297 = vadd.f32 0.0, %v296
      %v298 = vpop.f32.mrb[0].mxu0
      %v299 = vpop.f32.mrb[0].mxu0
      %v300 = vadd.f32 0.0, %v299
      %v301 = vpop.f32.mrb[0].mxu0
      %302 = vdwg.mxu0
      %v303 = vpack.c.bf16 %v300, %v297
      %v305 = vunpack.c.l.b16 %v303
      %v306 = vunpack.c.h.b16 %v303
      %v307 = vpack.c.b16 %v305, %v305
      %v308 = vpack.c.b16 %v306, %v306
      %311 = vst [vmem:[%s187] sm:$0xf] %v307
      %312 = vst [vmem:[%s187 + $0x4] sm:$0xf] %v308
      %s313 = smul.u32 2, %s18
      %p314 = scmp.lt.s32.totalorder %s17, 2
      %s315 = scalar_select %p314, %s17, 2
      %p316 = scmp.lt.s32.totalorder %s313, 1
      %s317 = scalar_select %p316, %s313, 1
      %s318 = smul.addr %s315, 2
      %s319 = sadd.s32 %s317, %s318
      %s320 = smul.addr %s319, 4
      %s321 = scalar_lea.vmem %s2, %s320
      // Predicated region
      $region29: #{rgcn_forward.6} parent=27 // pred_check
        %p322 = pneg %p97
      $region30: #{rgcn_forward.6} parent=27 // pred_check_branch
        %324 = sbr.rel (%p322) target = $region32
      $region31: #{rgcn_forward.6} parent=27 // pred_region
        %s325 = smul.u32 2, %s18
      $region32: #{rgcn_forward.6} parent=27 // pred_fallthru
        _
    $region28: #{rgcn_forward.6} parent=5 // pred_fallthru
      _
    %p326 = scmp.le.s32.totalorder 2, %s8
    // Predicated region
    $region33: #{rgcn_forward.6} parent=5 // pred_check
      %p327 = pneg %p326
    $region34: #{rgcn_forward.6} parent=5 // pred_check_branch
      %329 = sbr.rel (%p327) target = $region36
    $region35: #{rgcn_forward.6} parent=5 // pred_region
      %s330 = ssub.s32 %s8, 2
      // Predicated region
      $region37: #{rgcn_forward.6} parent=35 // pred_check
        %p331 = pneg %p103
      $region38: #{rgcn_forward.6} parent=35 // pred_check_branch
        %333 = sbr.rel (%p331) target = $region40
      $region39: #{rgcn_forward.6} parent=35 // pred_region
        %s334 = smul.u32 2, %s20
        %p335 = scmp.lt.s32.totalorder %s19, 2
        %s336 = scalar_select %p335, %s19, 2
        %p337 = scmp.lt.s32.totalorder %s334, 1
        %s338 = scalar_select %p337, %s334, 1
        %s339 = smul.addr %s336, 2
        %s340 = sadd.s32 %s338, %s339
        %s341 = smul.addr %s340, 4
        %s342 = scalar_lea.vmem %s2, %s341
      $region40: #{rgcn_forward.6} parent=35 // pred_fallthru
        _
    $region36: #{rgcn_forward.6} parent=5 // pred_fallthru
      _
  $region6: #{rgcn_forward.6} parent=0 // loop_footer
    %s12 = sadd.s32 1, %s8
  $region7: #{rgcn_forward.6} parent=0 // loop_footer_branch
    %7 = sbr.rel target = $region3
  $region8: #{rgcn_forward.6} parent=0 // loop_exit
    _

// kernel: rgcn_forward.11
$region0: #{rgcn_forward.11}
  #allocation0 [shape = 'u32[]', space=smem, size = 0x4, offset = 0x4, fixed_abs, tag = 'smem constant byte address 0x4 - core index']
  #allocation1 [shape = 'u32[144,128]{1,0:T(1,128)}', space=vmem, size = 0x12000, scoped, tag = 'internal scratch']
  %s0 = inlined_call_operand.vmem [shape: bf16[3,16,16], index: 0, kind: input, shape index: {}]
  %s1 = inlined_call_operand.vmem [shape: bf16[3,16,128], index: 1, kind: input, shape index: {}]
  %s2 = inlined_call_operand.vmem [shape: f32[1,128], index: 2, kind: input, shape index: {}]
  %s3 = inlined_call_operand.vmem [shape: f32[16,128], index: 3, kind: output, shape index: {}]
  %s4 = sld [smem:[#allocation0]]
  $region53: #{rgcn_forward.11} parent=0
    _
  %s6 = ssub.s32 1, %s4
  %s7 = scalar_select 0, %s6, %s4
  loop: start=0, step=1, limit=5
  $region2: #{rgcn_forward.11} parent=0 // loop_pre_header
    _
  $region3: #{rgcn_forward.11} parent=0 // loop_header
    %s9 = sphi 0, %s13
    %p10 = scmp.ge.s32.totalorder %s9, 5
    %s16 = sphi 0, %s28
    %s17 = sphi 0, %s24
    %s18 = sphi 0, %s16
    %s19 = sphi 0, %s17
    %s20 = sphi 0, %s18
    %s21 = sphi 0, %s19
    %s33 = sphi 0, %s35
    %s36 = sphi 0, %s33
    %s37 = sphi 0, %s36
    %s53 = sphi 0, %s37
    %s59 = sphi 0, %s61
    %s62 = sphi 0, %s59
    %s63 = sphi 0, %s62
    %s79 = sphi 0, %s63
    %s83 = sphi 0, %s83
    %s85 = sphi 0, %s83
    %s86 = sphi 0, %s85
    %s100 = sphi 0, %s86
    %s106 = sphi 0, %s108
    %s109 = sphi 0, %s106
    %s110 = sphi 0, %s109
    %s126 = sphi 0, %s110
  $region4: #{rgcn_forward.11} parent=0 // loop_header_branch
    %12 = sbr.rel (%p10) target = $region8
  $region5: #{rgcn_forward.11} parent=0 // loop_body
    %s14 = ssub.s32 %s9, 1
    %s15 = ssub.s32 %s9, 2
    %s22 = sadd.s32 1, %s17
    %p23 = scmp.ge.s32.totalorder %s22, 3
    %s24 = scalar_select %p23, 0, %s22
    %s25 = sadd.s32 1, %s16
    %s26 = scalar_select %p23, %s25, %s16
    %p27 = scmp.ge.s32.totalorder %s26, 1
    %s28 = scalar_select %p27, 0, %s26
    %s29 = ssub.s32 %s17, %s24
    %s30 = ssub.s32 %s16, %s28
    %s31 = sor.u32 %s29, %s30
    %p32 = scmp.eq.s32.totalorder %s31, 0
    %s34 = sadd.s32 %s33, 1
    %s35 = scalar_select %p32, %s33, %s34
    %p38 = pneg %p32
    %p39 = scmp.eq.s32.totalorder %s9, 2
    %p40 = por %p38, %p39
    %p41 = scmp.ne.s32.totalorder %s33, %s36
    %p42 = scmp.eq.s32.totalorder %s9, 0
    %p43 = por %p41, %p42
    %p44 = scmp.ne.s32.totalorder %s33, %s36
    %p45 = scmp.eq.s32.totalorder %s14, 2
    %p46 = por %p44, %p45
    %p47 = scmp.ne.s32.totalorder %s36, %s37
    %p48 = scmp.eq.s32.totalorder %s14, 0
    %p49 = por %p47, %p48
    %p50 = scmp.ne.s32.totalorder %s36, %s37
    %p51 = scmp.eq.s32.totalorder %s15, 2
    %p52 = por %p50, %p51
    %p54 = scmp.ne.s32.totalorder %s37, %s53
    %p55 = scmp.eq.s32.totalorder %s15, 0
    %p56 = por %p54, %p55
    %s57 = ssub.s32 %s17, %s24
    %p58 = scmp.eq.s32.totalorder %s57, 0
    %s60 = sadd.s32 %s59, 1
    %s61 = scalar_select %p58, %s59, %s60
    %p64 = pneg %p58
    %p65 = scmp.eq.s32.totalorder %s9, 2
    %p66 = por %p64, %p65
    %p67 = scmp.ne.s32.totalorder %s59, %s62
    %p68 = scmp.eq.s32.totalorder %s9, 0
    %p69 = por %p67, %p68
    %p70 = scmp.ne.s32.totalorder %s59, %s62
    %p71 = scmp.eq.s32.totalorder %s14, 2
    %p72 = por %p70, %p71
    %p73 = scmp.ne.s32.totalorder %s62, %s63
    %p74 = scmp.eq.s32.totalorder %s14, 0
    %p75 = por %p73, %p74
    %p76 = scmp.ne.s32.totalorder %s62, %s63
    %p77 = scmp.eq.s32.totalorder %s15, 2
    %p78 = por %p76, %p77
    %p80 = scmp.ne.s32.totalorder %s63, %s79
    %p81 = scmp.eq.s32.totalorder %s15, 0
    %p82 = por %p80, %p81
    %s84 = sadd.s32 %s83, 1
    %p87 = scmp.eq.s32.totalorder %s9, 2
    %p88 = scmp.ne.s32.totalorder %s83, %s85
    %p89 = scmp.eq.s32.totalorder %s9, 0
    %p90 = por %p88, %p89
    %p91 = scmp.ne.s32.totalorder %s83, %s85
    %p92 = scmp.eq.s32.totalorder %s14, 2
    %p93 = por %p91, %p92
    %p94 = scmp.ne.s32.totalorder %s85, %s86
    %p95 = scmp.eq.s32.totalorder %s14, 0
    %p96 = por %p94, %p95
    %p97 = scmp.ne.s32.totalorder %s85, %s86
    %p98 = scmp.eq.s32.totalorder %s15, 2
    %p99 = por %p97, %p98
    %p101 = scmp.ne.s32.totalorder %s86, %s100
    %p102 = scmp.eq.s32.totalorder %s15, 0
    %p103 = por %p101, %p102
    %s104 = ssub.s32 %s16, %s28
    %p105 = scmp.eq.s32.totalorder %s104, 0
    %s107 = sadd.s32 %s106, 1
    %s108 = scalar_select %p105, %s106, %s107
    %p111 = pneg %p105
    %p112 = scmp.eq.s32.totalorder %s9, 2
    %p113 = por %p111, %p112
    %p114 = scmp.ne.s32.totalorder %s106, %s109
    %p115 = scmp.eq.s32.totalorder %s9, 0
    %p116 = por %p114, %p115
    %p117 = scmp.ne.s32.totalorder %s106, %s109
    %p118 = scmp.eq.s32.totalorder %s14, 2
    %p119 = por %p117, %p118
    %p120 = scmp.ne.s32.totalorder %s109, %s110
    %p121 = scmp.eq.s32.totalorder %s14, 0
    %p122 = por %p120, %p121
    %p123 = scmp.ne.s32.totalorder %s109, %s110
    %p124 = scmp.eq.s32.totalorder %s15, 2
    %p125 = por %p123, %p124
    %p127 = scmp.ne.s32.totalorder %s110, %s126
    %p128 = scmp.eq.s32.totalorder %s15, 0
    %p129 = por %p127, %p128
    %p130 = scmp.le.s32.totalorder 1, %s9
    %p131 = scmp.lt.s32.totalorder %s9, 4
    %p132 = pnand %p130, %p131
    %p133 = pneg %p132
    // Predicated region
    $region9: #{rgcn_forward.11} parent=5 // pred_check
      _
    $region10: #{rgcn_forward.11} parent=5 // pred_check_branch
      %135 = sbr.rel (%p132) target = $region12
    $region11: #{rgcn_forward.11} parent=5 // pred_region
      %s136 = ssub.s32 %s9, 1
      // Predicated region
      $region13: #{rgcn_forward.11} parent=11 // pred_check
        %p137 = pneg %p96
      $region14: #{rgcn_forward.11} parent=11 // pred_check_branch
        %139 = sbr.rel (%p137) target = $region16
      $region15: #{rgcn_forward.11} parent=11 // pred_region
        _
      $region16: #{rgcn_forward.11} parent=11 // pred_fallthru
        _
    $region12: #{rgcn_forward.11} parent=5 // pred_fallthru
      _
    %p140 = scmp.lt.s32.totalorder %s9, 3
    // Predicated region
    $region17: #{rgcn_forward.11} parent=5 // pred_check
      %p141 = pneg %p140
    $region18: #{rgcn_forward.11} parent=5 // pred_check_branch
      %143 = sbr.rel (%p141) target = $region20
    $region19: #{rgcn_forward.11} parent=5 // pred_region
      // Predicated region
      $region21: #{rgcn_forward.11} parent=19 // pred_check
        %p144 = pneg %p43
      $region22: #{rgcn_forward.11} parent=19 // pred_check_branch
        %146 = sbr.rel (%p144) target = $region24
      $region23: #{rgcn_forward.11} parent=19 // pred_region
        %s147 = smul.u32 2, %s16
        %p148 = scmp.lt.s32.totalorder %s17, 2
        %s149 = scalar_select %p148, %s17, 2
        %p150 = scmp.lt.s32.totalorder %s147, 1
        %s151 = scalar_select %p150, %s147, 1
        %s152 = smul.addr %s149, 2
        %s153 = sadd.s32 %s151, %s152
        %s154 = smul.addr %s153, 4
        %s155 = scalar_lea.vmem %s0, %s154
        %s156 = smul.u32 2, %s16
      $region24: #{rgcn_forward.11} parent=19 // pred_fallthru
        _
      // Predicated region
      $region25: #{rgcn_forward.11} parent=19 // pred_check
        %p157 = pneg %p69
      $region26: #{rgcn_forward.11} parent=19 // pred_check_branch
        %159 = sbr.rel (%p157) target = $region28
      $region27: #{rgcn_forward.11} parent=19 // pred_region
        %p160 = scmp.lt.s32.totalorder %s17, 2
        %s161 = scalar_select %p160, %s17, 2
        %s162 = smul.addr %s161, 2
        %s163 = smul.addr %s162, 4
        %s164 = scalar_lea.vmem %s1, %s163
      $region28: #{rgcn_forward.11} parent=19 // pred_fallthru
        _
    $region20: #{rgcn_forward.11} parent=5 // pred_fallthru
      _
    %p165 = scmp.le.s32.totalorder 1, %s9
    %p166 = scmp.lt.s32.totalorder %s9, 4
    %p167 = pnand %p165, %p166
    %p168 = pneg %p167
    // Predicated region
    $region29: #{rgcn_forward.11} parent=5 // pred_check
      _
    $region30: #{rgcn_forward.11} parent=5 // pred_check_branch
      %170 = sbr.rel (%p167) target = $region32
    $region31: #{rgcn_forward.11} parent=5 // pred_region
      %s171 = ssub.s32 %s9, 1
      %s172 = smul.u32 2, %s18
      %p173 = scmp.lt.s32.totalorder %s19, 2
      %s174 = scalar_select %p173, %s19, 2
      %p175 = scmp.lt.s32.totalorder %s172, 1
      %s176 = scalar_select %p175, %s172, 1
      %s177 = smul.addr %s174, 2
      %s178 = sadd.s32 %s176, %s177
      %s179 = smul.addr %s178, 4
      %s180 = scalar_lea.vmem %s0, %s179
      %p181 = pneg %p49
      %p182 = pneg %p46
      %p183 = scmp.lt.s32.totalorder %s19, 2
      %s184 = scalar_select %p183, %s19, 2
      %s185 = smul.addr %s184, 2
      %s186 = smul.addr %s185, 4
      %s187 = scalar_lea.vmem %s1, %s186
      %p188 = pneg %p75
      %p189 = pneg %p72
      %p190 = pneg %p96
      %p191 = pneg %p93
      %p192 = pneg %p122
      %p193 = pneg %p119
      %s194 = smul.u32 2, %s18
      %p195 = scmp.lt.s32.totalorder %s194, 1
      %s196 = scalar_select %p195, %s194, 1
      %s197 = smul.addr %s196, 8
      %s198 = scalar_lea.vmem %s3, %s197
      %s199 = smul.u32 2, %s18
      %p200 = scmp.lt.s32.totalorder %s19, 2
      %s201 = scalar_select %p200, %s19, 2
      %p202 = scmp.lt.s32.totalorder %s199, 1
      %s203 = scalar_select %p202, %s199, 1
      %s204 = smul.addr %s201, 2
      %s205 = sadd.s32 %s203, %s204
      %s206 = smul.addr %s205, 4
      %s207 = scalar_lea.vmem %s0, %s206
      %s208 = smul.u32 2, %s18
      %p209 = scmp.lt.s32.totalorder %s19, 2
      %s210 = scalar_select %p209, %s19, 2
      %s211 = smul.addr %s210, 2
      %s212 = smul.addr %s211, 4
      %s213 = scalar_lea.vmem %s1, %s212
      %s214 = smul.u32 2, %s18
      %p215 = scmp.lt.s32.totalorder %s214, 1
      %s216 = scalar_select %p215, %s214, 1
      %s217 = smul.addr %s216, 8
      %s218 = scalar_lea.vmem %s3, %s217
      %s219 = smul.u32 2, %s18
      %p221 = scmp.eq.s32.totalorder %s19, 0
      // Predicated region
      $region33: #{rgcn_forward.11} parent=31 // pred_check
        %p222 = pneg %p221
      $region34: #{rgcn_forward.11} parent=31 // pred_check_branch
        %224 = sbr.rel (%p222) target = $region36
      $region35: #{rgcn_forward.11} parent=31 // pred_region
        %225 = vst [vmem:[%s218] sm:$0xff] 0.0
        %226 = vst [vmem:[%s218 + $0x8] sm:$0xff] 0.0
      $region36: #{rgcn_forward.11} parent=31 // pred_fallthru
        _
      %v227 = vld [vmem:[%s218] sm:$0xff]
      %v228 = vld [vmem:[%s218 + $0x8] sm:$0xff]
      %v229 = vld [vmem:[%s207] sm:$0xf]
      %v230 = vld [vmem:[%s207 + $0x4] sm:$0xf]
      %v231 = vld [vmem:[%s213] sm:$0xf]
      %v232 = vld [vmem:[%s213 + $0x4] sm:$0xf]
      %v235 = vunpack.c.l.b16 %v229
      %v236 = vunpack.c.l.b16 %v230
      %v237 = vpack.c.b16 %v236, %v235
      %v240 = vunpack.c.l.b16 %v231
      %v241 = vunpack.c.l.b16 %v232
      %v242 = vpack.c.b16 %v241, %v240
      %vm244 = vcmask 130048
      %v246 = vsel %vm244, %v237, 0
      %248 = vmatprep.subr.bf16.mxu0 0
      %249 = vmatpush1.bf16.msra.mxu0 %v242
      %250 = vmatprep.subr.bf16.mxu0 0
      %251 = vmatpush1.bf16.msra.mxu0 0
      %252 = vmatprep.subr.bf16.mxu0 0
      %253 = vmatpush1.bf16.msra.mxu0 0
      %254 = vmatprep.subr.bf16.mxu0 0
      %255 = vmatpush1.bf16.msra.mxu0 0
      %256 = vmatprep.subr.bf16.mxu0 0
      %257 = vmatpush1.bf16.msra.mxu0 0
      %258 = vmatprep.subr.bf16.mxu0 0
      %259 = vmatpush1.bf16.msra.mxu0 0
      %260 = vmatprep.subr.bf16.mxu0 0
      %261 = vmatpush1.bf16.msra.mxu0 0
      %262 = vmatprep.subr.bf16.mxu0 0
      %263 = vmatpush1.bf16.msra.mxu0 0
      %264 = vmatprep.subr.bf16.mxu0 0
      %265 = vmatpush1.bf16.msra.mxu0 0
      %266 = vmatprep.subr.bf16.mxu0 0
      %267 = vmatpush1.bf16.msra.mxu0 0
      %268 = vmatprep.subr.bf16.mxu0 0
      %269 = vmatpush1.bf16.msra.mxu0 0
      %270 = vmatprep.subr.bf16.mxu0 0
      %271 = vmatpush1.bf16.msra.mxu0 0
      %272 = vmatprep.subr.bf16.mxu0 0
      %273 = vmatpush1.bf16.msra.mxu0 0
      %274 = vmatprep.subr.bf16.mxu0 0
      %275 = vmatpush1.bf16.msra.mxu0 0
      %276 = vmatprep.subr.bf16.mxu0 0
      %277 = vmatpush1.bf16.msra.mxu0 0
      %278 = vmatprep.subr.bf16.mxu0 0
      %279 = vmatpush1.bf16.msra.mxu0 0
      %280 = vmatprep.mubr.bf16.mxu0 0
      %281 = vmatmul.mubr.bf16.gmra.mrb[0].mxu0 %v246
      %v282 = vpop.f32.mrb[0].mxu0
      %v283 = vadd.f32 0.0, %v282
      %v284 = vpop.f32.mrb[0].mxu0
      %v285 = vpop.f32.mrb[0].mxu0
      %v286 = vadd.f32 0.0, %v285
      %v287 = vpop.f32.mrb[0].mxu0
      %288 = vdwg.mxu0
      %v289 = vadd.f32 %v227, %v283
      %v290 = vadd.f32 %v228, %v286
      %291 = vst [vmem:[%s218] sm:$0xff] %v289
      %292 = vst [vmem:[%s218 + $0x8] sm:$0xff] %v290
      %p293 = scmp.eq.s32.totalorder %s19, 2
      // Predicated region
      $region37: #{rgcn_forward.11} parent=31 // pred_check
        %p294 = pneg %p293
      $region38: #{rgcn_forward.11} parent=31 // pred_check_branch
        %296 = sbr.rel (%p294) target = $region40
      $region39: #{rgcn_forward.11} parent=31 // pred_region
        %v297 = vld [vmem:[%s218] sm:$0xff]
        %v298 = vld [vmem:[%s218 + $0x8] sm:$0xff]
        %v299 = vld [vmem:[%s2] sm:$0x1]
        %v301 = vlaneseq
        %v302 = vshrl.u32 %v301, 7
        %v303 = vsub.s32 0, %v302
        %v304 = vrot.slane %v299, %v303
        %v306 = vadd.f32 %v297, %v304
        %v307 = vadd.f32 %v298, %v304
        %308 = vst [vmem:[%s218] sm:$0xff] %v306
        %309 = vst [vmem:[%s218 + $0x8] sm:$0xff] %v307
      $region40: #{rgcn_forward.11} parent=31 // pred_fallthru
        _
      %s310 = smul.u32 2, %s18
      %p311 = scmp.lt.s32.totalorder %s310, 1
      %s312 = scalar_select %p311, %s310, 1
      %s313 = smul.addr %s312, 8
      %s314 = scalar_lea.vmem %s3, %s313
      // Predicated region
      $region41: #{rgcn_forward.11} parent=31 // pred_check
        %p315 = pneg %p119
      $region42: #{rgcn_forward.11} parent=31 // pred_check_branch
        %317 = sbr.rel (%p315) target = $region44
      $region43: #{rgcn_forward.11} parent=31 // pred_region
        %s318 = smul.u32 2, %s18
      $region44: #{rgcn_forward.11} parent=31 // pred_fallthru
        _
      // Predicated region
      $region45: #{rgcn_forward.11} parent=31 // pred_check
        %p319 = pneg %p119
      $region46: #{rgcn_forward.11} parent=31 // pred_check_branch
        %321 = sbr.rel (%p319) target = $region48
      $region47: #{rgcn_forward.11} parent=31 // pred_region
        %s322 = smul.u32 2, %s18
        %p323 = scmp.lt.s32.totalorder %s322, 1
        %s324 = scalar_select %p323, %s322, 1
        %s325 = smul.addr %s324, 8
        %s326 = scalar_lea.vmem %s3, %s325
      $region48: #{rgcn_forward.11} parent=31 // pred_fallthru
        _
    $region32: #{rgcn_forward.11} parent=5 // pred_fallthru
      _
    %p327 = scmp.le.s32.totalorder 2, %s9
    // Predicated region
    $region49: #{rgcn_forward.11} parent=5 // pred_check
      %p328 = pneg %p327
    $region50: #{rgcn_forward.11} parent=5 // pred_check_branch
      %330 = sbr.rel (%p328) target = $region52
    $region51: #{rgcn_forward.11} parent=5 // pred_region
      %s331 = ssub.s32 %s9, 2
    $region52: #{rgcn_forward.11} parent=5 // pred_fallthru
      _
  $region6: #{rgcn_forward.11} parent=0 // loop_footer
    %s13 = sadd.s32 1, %s9
  $region7: #{rgcn_forward.11} parent=0 // loop_footer_branch
    %8 = sbr.rel target = $region3
  $region8: #{rgcn_forward.11} parent=0 // loop_exit
    _

</llo_original>
